<compile_context>
chip_gen: v7x
topology: tpu7x:2x2x1
jax: 0.10.0
libtpu: 0.0.40
codegen_flags: <defaults>
</compile_context>

<pallas_src>
import jax
import jax.numpy as jnp
from jax.experimental import pallas as pl
from jax.experimental.pallas import tpu as pltpu
import numpy as np

_HIGH = jax.lax.Precision.HIGHEST  # glue matrices are tiny; keep them exact f32


# ---------------------------------------------------------------------------
# Plain-JAX glue: pan/tilt -> R, T, K -> single world->screen 4x4 per camera
# ---------------------------------------------------------------------------
def pan_tilt_to_orientations(pan, tilt):
    """R = Rz(pan) @ Rx(tilt), shape (n,3,3). Mirrors torch_pan_tilt_to_orientations."""
    cp, sp = jnp.cos(pan), jnp.sin(pan)
    ct, st = jnp.cos(tilt), jnp.sin(tilt)
    z = jnp.zeros_like(pan)
    o = jnp.ones_like(pan)
    rpan = jnp.stack([jnp.stack([cp, -sp, z], -1),
                      jnp.stack([sp, cp, z], -1),
                      jnp.stack([z, z, o], -1)], -2)          # (n,3,3)
    rtilt = jnp.stack([jnp.stack([o, z, z], -1),
                       jnp.stack([z, ct, -st], -1),
                       jnp.stack([z, st, ct], -1)], -2)       # (n,3,3)
    return jnp.matmul(rpan, rtilt, precision=_HIGH)


def world_to_screen_matrices(pan, tilt, position, focal, image_shape):
    """Per-camera row-vector projective matrix M with
       [p, 1] @ M = homogeneous screen coords (divide by the last component).

    Composes the module's world->view (R, T), its hand-built K, and PyTorch3D's
    NDC->screen (+xy flip) transform into one 4x4 per camera.
    """
    n = pan.shape[0]
    dtype = jnp.float32
    R = pan_tilt_to_orientations(pan.astype(dtype), tilt.astype(dtype))      # (n,3,3)
    T = -jnp.einsum("nij,ni->nj", R, position.astype(dtype), precision=_HIGH)  # -(R^T p)
    f = (1.0 / focal).astype(dtype)

    # world -> view (row-vector convention): [p,1] @ M_wv = p @ R + T
    m_wv = jnp.zeros((n, 4, 4), dtype)
    m_wv = m_wv.at[:, :3, :3].set(R).at[:, 3, :3].set(T).at[:, 3, 3].set(1.0)

    # The module's K (column-vector convention); PyTorch3D applies K^T to row vectors.
    k = jnp.zeros((n, 4, 4), dtype)
    k = (k.at[:, 0, 0].set(f).at[:, 1, 1].set(f)
          .at[:, 2, 2].set(1.0).at[:, 2, 3].set(1.0).at[:, 3, 2].set(-1.0))
    k_rowvec = jnp.swapaxes(k, 1, 2)

    # NDC -> screen with xy flip (PyTorch3D >= 0.6 convention):
    #   sx = W/2 - s*x_ndc, sy = H/2 - s*y_ndc, sz = z_ndc,  s = min(H, W)/2.
    # It is affine, so it composes with the projective matrix BEFORE the divide.
    # TODO(synk): PyTorch3D < 0.6 used the half-pixel (size-1)/2 screen convention.
    h_img, w_img = image_shape
    s = min(h_img, w_img) / 2.0
    ndc2screen = jnp.array([[-s, 0.0, 0.0, 0.0],
                            [0.0, -s, 0.0, 0.0],
                            [0.0, 0.0, 1.0, 0.0],
                            [w_img / 2.0, h_img / 2.0, 0.0, 1.0]], dtype)

    m_full = jnp.matmul(jnp.matmul(m_wv, k_rowvec, precision=_HIGH),
                        ndc2screen, precision=_HIGH)           # (n,4,4)
    return m_full


# ---------------------------------------------------------------------------
# Pallas kernel: apply the N per-camera projective 4x4s + perspective divide
# to a lane-dense (3, TILE) block of points.
# ---------------------------------------------------------------------------
def _project_points_kernel(cam_ref, pts_ref, out_ref):
    # cam_ref : SMEM (n_cam, 16) f32 — row-major flattened row-vector matrices
    # pts_ref : VMEM (3, TILE)       — x / y / z rows of the current point tile
    # out_ref : VMEM (n_cam, 3, TILE)— screen x / y / z for every camera
    n_cam = out_ref.shape[0]
    x = pts_ref[0:1, :].astype(jnp.float32)     # (1, TILE); upcast (if bf16) in VMEM
    y = pts_ref[1:2, :].astype(jnp.float32)
    z = pts_ref[2:3, :].astype(jnp.float32)

    for cam in range(n_cam):                    # static unroll; n_cam is small
        def m(r, c, _cam=cam):
            return cam_ref[_cam, 4 * r + c]     # scalar read from SMEM

        hx = x * m(0, 0) + y * m(1, 0) + z * m(2, 0) + m(3, 0)
        hy = x * m(0, 1) + y * m(1, 1) + z * m(2, 1) + m(3, 1)
        hz = x * m(0, 2) + y * m(1, 2) + z * m(2, 2) + m(3, 2)
        hw = x * m(0, 3) + y * m(1, 3) + z * m(2, 3) + m(3, 3)
        inv_w = 1.0 / hw                        # perspective divide
        out_ref[cam, 0:1, :] = hx * inv_w
        out_ref[cam, 1:2, :] = hy * inv_w
        out_ref[cam, 2:3, :] = hz * inv_w


def _round_up(x, m):
    return (x + m - 1) // m * m


def transform_points_screen(cam_mats, points, *, tile=2048):
    """points: (P, 3); cam_mats: (n_cam, 4, 4) row-vector world->screen matrices.
    Returns lane-dense (n_cam, 3, P) float32 screen coordinates."""
    n_cam = cam_mats.shape[0]
    p_count = points.shape[0]

    # One-time layout change to coordinate-major (3, P): costs ~12 B/point once,
    # but every load/store in the hot loop is then full lane width (vs. 3/128
    # lane utilization for a (P, 3) layout).
    pts = jnp.swapaxes(points, 0, 1)                              # (3, P)

    block = min(_round_up(p_count, 128), _round_up(tile, 128))
    p_pad = _round_up(p_count, block)
    if p_pad != p_count:
        pts = jnp.pad(pts, ((0, 0), (0, p_pad - p_count)))

    cams16 = cam_mats.astype(jnp.float32).reshape(n_cam, 16)
    grid = (p_pad // block,)

    out = pl.pallas_call(
        _project_points_kernel,
        out_shape=jax.ShapeDtypeStruct((n_cam, 3, p_pad), jnp.float32),
        grid_spec=pltpu.PrefetchScalarGridSpec(
            num_scalar_prefetch=0,
            grid=grid,
            in_specs=[
                # tiny per-camera matrix table: whole array resident in SMEM
                pl.BlockSpec(memory_space=pltpu.MemorySpace.SMEM),
                # lane-dense point tile, pipelined across the grid
                pl.BlockSpec((3, block), lambda j: (0, j)),
            ],
            out_specs=pl.BlockSpec((n_cam, 3, block), lambda j: (0, 0, j)),
        ),
        compiler_params=pltpu.CompilerParams(
            # no cross-step state -> fully parallel grid (megacore-friendly on v7x)
            dimension_semantics=("parallel",)),
    )(cams16, pts)

    return out[:, :, :p_count]                                    # (n_cam, 3, P)


# ---------------------------------------------------------------------------
# PanTiltCameras.forward equivalent
# ---------------------------------------------------------------------------
def pan_tilt_cameras_forward(params, points, image_shape, *,
                             channels_last=True, tile=2048):
    """params: dict with pan (n,), tilt (n,), position (n,3), focal (n,).
    points: (P, 3) world points. Returns (n, P, 3) screen coords (matches the
    torch module) when channels_last=True; channels_last=False returns the
    lane-dense (n, 3, P) kernel layout with no extra transpose pass."""
    cam_mats = world_to_screen_matrices(params["pan"], params["tilt"],
                                        params["position"], params["focal"],
                                        image_shape)
    screen = transform_points_screen(cam_mats, points, tile=tile)   # (n, 3, P)
    if channels_last:
        screen = jnp.swapaxes(screen, 1, 2)                          # (n, P, 3)
    return screen


# ---------------------------------------------------------------------------
# Reference (independent, step-by-step, float64) + demo
# ---------------------------------------------------------------------------
def _numpy_reference(pan, tilt, position, focal, points, image_shape):
    pan = np.asarray(pan, np.float64)
    tilt = np.asarray(tilt, np.float64)
    position = np.asarray(position, np.float64)
    focal = np.asarray(focal, np.float64)
    pts = np.asarray(points, np.float64)
    h_img, w_img = image_shape
    s = min(h_img, w_img) / 2.0
    outs = []
    for i in range(pan.shape[0]):
        cp, sp = np.cos(pan[i]), np.sin(pan[i])
        ct, st = np.cos(tilt[i]), np.sin(tilt[i])
        rpan = np.array([[cp, -sp, 0.0], [sp, cp, 0.0], [0.0, 0.0, 1.0]])
        rtilt = np.array([[1.0, 0.0, 0.0], [0.0, ct, -st], [0.0, st, ct]])
        rot = rpan @ rtilt
        trans = -(rot.T @ position[i])
        f = 1.0 / focal[i]
        view = pts @ rot + trans                               # row-vector convention
        hom = np.stack([f * view[:, 0], f * view[:, 1],
                        view[:, 2] + 1.0, -view[:, 2]], axis=1)
        ndc = hom[:, :3] / hom[:, 3:4]
        sx = w_img / 2.0 - s * ndc[:, 0]
        sy = h_img / 2.0 - s * ndc[:, 1]
        outs.append(np.stack([sx, sy, ndc[:, 2]], axis=1))
    return np.stack(outs, axis=0)                              # (n, P, 3)


if __name__ == "__main__":
    key = jax.random.PRNGKey(0)
    k_pan, k_tilt, k_pxy, k_pz, k_foc, k_pts = jax.random.split(key, 6)

    N_CAM = 2
    N_PTS = 500                      # deliberately not a multiple of 128 (tests padding)
    IMAGE_SHAPE = (108, 192)         # (height, width)

    pan = jax.random.uniform(k_pan, (N_CAM,), jnp.float32, -0.3, 0.3)
    tilt = jax.random.uniform(k_tilt, (N_CAM,), jnp.float32, -0.2, 0.2)
    position = jnp.concatenate(
        [jax.random.uniform(k_pxy, (N_CAM, 2), jnp.float32, -2.0, 2.0),
         10.0 + jax.random.uniform(k_pz, (N_CAM, 1), jnp.float32, -1.0, 1.0)],
        axis=1)
    focal = jax.random.uniform(k_foc, (N_CAM,), jnp.float32, 0.5, 1.5)
    # Points well in front of every camera so the perspective divide is
    # well conditioned for the numeric check.
    points = jax.random.uniform(k_pts, (N_PTS, 3), jnp.float32, -3.0, 3.0)
    points = points.at[:, 2].multiply(0.3)

    params = dict(pan=pan, tilt=tilt, position=position, focal=focal)

    # tile=256 only to exercise a multi-step grid at this toy size; the default
    # (2048 lanes) is the "large block" choice for realistic point counts.
    screen = pan_tilt_cameras_forward(params, points, IMAGE_SHAPE, tile=256)
    screen = jax.block_until_ready(screen)
    assert screen.shape == (N_CAM, N_PTS, 3), screen.shape

    ref = _numpy_reference(pan, tilt, position, focal, points, IMAGE_SHAPE)
    max_err = float(np.max(np.abs(np.asarray(screen) - ref)))
    assert np.allclose(np.asarray(screen), ref, rtol=1e-4, atol=1e-3), max_err

    print("KERNEL_OK")
</pallas_src>

<mosaic_0001>
module attributes {stable_mosaic.version = 11 : i64} {
  func.func @_project_points_kernel(%arg0: i32, %arg1: memref<2x16xf32, #tpu.memory_space<smem>>, %arg2: memref<3x256xf32, #tpu.memory_space<vmem>>, %arg3: memref<2x3x256xf32, #tpu.memory_space<vmem>>) attributes {dimension_semantics = [#tpu.dimension_semantics<parallel>], iteration_bounds = array<i64: 2>, scalar_prefetch = 0 : i64, scratch_operands = 0 : i64, tpu.core_type = #tpu.core_type<tc>, window_params = [{transform_indices = @transform_0, window_bounds = array<i64: 2, 16>}, {transform_indices = @transform_1, window_bounds = array<i64: 3, 256>}, {transform_indices = @transform_2, window_bounds = array<i64: 2, 3, 256>}]} {
    %c0 = arith.constant 0 : index
    %c0_0 = arith.constant 0 : index
    %0 = vector.load %arg2[%c0, %c0_0] : memref<3x256xf32, #tpu.memory_space<vmem>>, vector<1x256xf32>
    %c1 = arith.constant 1 : index
    %c0_1 = arith.constant 0 : index
    %1 = vector.load %arg2[%c1, %c0_1] : memref<3x256xf32, #tpu.memory_space<vmem>>, vector<1x256xf32>
    %c2 = arith.constant 2 : index
    %c0_2 = arith.constant 0 : index
    %2 = vector.load %arg2[%c2, %c0_2] : memref<3x256xf32, #tpu.memory_space<vmem>>, vector<1x256xf32>
    %c0_3 = arith.constant 0 : index
    %c0_4 = arith.constant 0 : index
    %3 = memref.load %arg1[%c0_3, %c0_4] : memref<2x16xf32, #tpu.memory_space<smem>>
    %4 = vector.broadcast %3 : f32 to vector<1x256xf32>
    %5 = arith.mulf %0, %4 : vector<1x256xf32>
    %c0_5 = arith.constant 0 : index
    %c4 = arith.constant 4 : index
    %6 = memref.load %arg1[%c0_5, %c4] : memref<2x16xf32, #tpu.memory_space<smem>>
    %7 = vector.broadcast %6 : f32 to vector<1x256xf32>
    %8 = arith.mulf %1, %7 : vector<1x256xf32>
    %9 = arith.addf %5, %8 : vector<1x256xf32>
    %c0_6 = arith.constant 0 : index
    %c8 = arith.constant 8 : index
    %10 = memref.load %arg1[%c0_6, %c8] : memref<2x16xf32, #tpu.memory_space<smem>>
    %11 = vector.broadcast %10 : f32 to vector<1x256xf32>
    %12 = arith.mulf %2, %11 : vector<1x256xf32>
    %13 = arith.addf %9, %12 : vector<1x256xf32>
    %c0_7 = arith.constant 0 : index
    %c12 = arith.constant 12 : index
    %14 = memref.load %arg1[%c0_7, %c12] : memref<2x16xf32, #tpu.memory_space<smem>>
    %15 = vector.broadcast %14 : f32 to vector<1x256xf32>
    %16 = arith.addf %13, %15 : vector<1x256xf32>
    %c0_8 = arith.constant 0 : index
    %c1_9 = arith.constant 1 : index
    %17 = memref.load %arg1[%c0_8, %c1_9] : memref<2x16xf32, #tpu.memory_space<smem>>
    %18 = vector.broadcast %17 : f32 to vector<1x256xf32>
    %19 = arith.mulf %0, %18 : vector<1x256xf32>
    %c0_10 = arith.constant 0 : index
    %c5 = arith.constant 5 : index
    %20 = memref.load %arg1[%c0_10, %c5] : memref<2x16xf32, #tpu.memory_space<smem>>
    %21 = vector.broadcast %20 : f32 to vector<1x256xf32>
    %22 = arith.mulf %1, %21 : vector<1x256xf32>
    %23 = arith.addf %19, %22 : vector<1x256xf32>
    %c0_11 = arith.constant 0 : index
    %c9 = arith.constant 9 : index
    %24 = memref.load %arg1[%c0_11, %c9] : memref<2x16xf32, #tpu.memory_space<smem>>
    %25 = vector.broadcast %24 : f32 to vector<1x256xf32>
    %26 = arith.mulf %2, %25 : vector<1x256xf32>
    %27 = arith.addf %23, %26 : vector<1x256xf32>
    %c0_12 = arith.constant 0 : index
    %c13 = arith.constant 13 : index
    %28 = memref.load %arg1[%c0_12, %c13] : memref<2x16xf32, #tpu.memory_space<smem>>
    %29 = vector.broadcast %28 : f32 to vector<1x256xf32>
    %30 = arith.addf %27, %29 : vector<1x256xf32>
    %c0_13 = arith.constant 0 : index
    %c2_14 = arith.constant 2 : index
    %31 = memref.load %arg1[%c0_13, %c2_14] : memref<2x16xf32, #tpu.memory_space<smem>>
    %32 = vector.broadcast %31 : f32 to vector<1x256xf32>
    %33 = arith.mulf %0, %32 : vector<1x256xf32>
    %c0_15 = arith.constant 0 : index
    %c6 = arith.constant 6 : index
    %34 = memref.load %arg1[%c0_15, %c6] : memref<2x16xf32, #tpu.memory_space<smem>>
    %35 = vector.broadcast %34 : f32 to vector<1x256xf32>
    %36 = arith.mulf %1, %35 : vector<1x256xf32>
    %37 = arith.addf %33, %36 : vector<1x256xf32>
    %c0_16 = arith.constant 0 : index
    %c10 = arith.constant 10 : index
    %38 = memref.load %arg1[%c0_16, %c10] : memref<2x16xf32, #tpu.memory_space<smem>>
    %39 = vector.broadcast %38 : f32 to vector<1x256xf32>
    %40 = arith.mulf %2, %39 : vector<1x256xf32>
    %41 = arith.addf %37, %40 : vector<1x256xf32>
    %c0_17 = arith.constant 0 : index
    %c14 = arith.constant 14 : index
    %42 = memref.load %arg1[%c0_17, %c14] : memref<2x16xf32, #tpu.memory_space<smem>>
    %43 = vector.broadcast %42 : f32 to vector<1x256xf32>
    %44 = arith.addf %41, %43 : vector<1x256xf32>
    %c0_18 = arith.constant 0 : index
    %c3 = arith.constant 3 : index
    %45 = memref.load %arg1[%c0_18, %c3] : memref<2x16xf32, #tpu.memory_space<smem>>
    %46 = vector.broadcast %45 : f32 to vector<1x256xf32>
    %47 = arith.mulf %0, %46 : vector<1x256xf32>
    %c0_19 = arith.constant 0 : index
    %c7 = arith.constant 7 : index
    %48 = memref.load %arg1[%c0_19, %c7] : memref<2x16xf32, #tpu.memory_space<smem>>
    %49 = vector.broadcast %48 : f32 to vector<1x256xf32>
    %50 = arith.mulf %1, %49 : vector<1x256xf32>
    %51 = arith.addf %47, %50 : vector<1x256xf32>
    %c0_20 = arith.constant 0 : index
    %c11 = arith.constant 11 : index
    %52 = memref.load %arg1[%c0_20, %c11] : memref<2x16xf32, #tpu.memory_space<smem>>
    %53 = vector.broadcast %52 : f32 to vector<1x256xf32>
    %54 = arith.mulf %2, %53 : vector<1x256xf32>
    %55 = arith.addf %51, %54 : vector<1x256xf32>
    %c0_21 = arith.constant 0 : index
    %c15 = arith.constant 15 : index
    %56 = memref.load %arg1[%c0_21, %c15] : memref<2x16xf32, #tpu.memory_space<smem>>
    %57 = vector.broadcast %56 : f32 to vector<1x256xf32>
    %58 = arith.addf %55, %57 : vector<1x256xf32>
    %cst = arith.constant 1.000000e+00 : f32
    %59 = vector.broadcast %cst : f32 to vector<1x256xf32>
    %60 = arith.divf %59, %58 : vector<1x256xf32>
    %61 = arith.mulf %16, %60 : vector<1x256xf32>
    %c0_22 = arith.constant 0 : index
    %c0_23 = arith.constant 0 : index
    %c0_24 = arith.constant 0 : index
    %62 = vector.load %arg3[%c0_22, %c0_23, %c0_24] : memref<2x3x256xf32, #tpu.memory_space<vmem>>, vector<1x1x256xf32>
    %63 = vector.shape_cast %62 : vector<1x1x256xf32> to vector<1x256xf32>
    %64 = vector.shape_cast %61 : vector<1x256xf32> to vector<1x1x256xf32>
    tpu.vector_store %arg3[%c0_22, %c0_23, %c0_24], %64 {strides = array<i32>} : memref<2x3x256xf32, #tpu.memory_space<vmem>>, vector<1x1x256xf32>,
    %65 = arith.mulf %30, %60 : vector<1x256xf32>
    %c0_25 = arith.constant 0 : index
    %c1_26 = arith.constant 1 : index
    %c0_27 = arith.constant 0 : index
    %66 = vector.load %arg3[%c0_25, %c1_26, %c0_27] : memref<2x3x256xf32, #tpu.memory_space<vmem>>, vector<1x1x256xf32>
    %67 = vector.shape_cast %66 : vector<1x1x256xf32> to vector<1x256xf32>
    %68 = vector.shape_cast %65 : vector<1x256xf32> to vector<1x1x256xf32>
    tpu.vector_store %arg3[%c0_25, %c1_26, %c0_27], %68 {strides = array<i32>} : memref<2x3x256xf32, #tpu.memory_space<vmem>>, vector<1x1x256xf32>,
    %69 = arith.mulf %44, %60 : vector<1x256xf32>
    %c0_28 = arith.constant 0 : index
    %c2_29 = arith.constant 2 : index
    %c0_30 = arith.constant 0 : index
    %70 = vector.load %arg3[%c0_28, %c2_29, %c0_30] : memref<2x3x256xf32, #tpu.memory_space<vmem>>, vector<1x1x256xf32>
    %71 = vector.shape_cast %70 : vector<1x1x256xf32> to vector<1x256xf32>
    %72 = vector.shape_cast %69 : vector<1x256xf32> to vector<1x1x256xf32>
    tpu.vector_store %arg3[%c0_28, %c2_29, %c0_30], %72 {strides = array<i32>} : memref<2x3x256xf32, #tpu.memory_space<vmem>>, vector<1x1x256xf32>,
    %c1_31 = arith.constant 1 : index
    %c0_32 = arith.constant 0 : index
    %73 = memref.load %arg1[%c1_31, %c0_32] : memref<2x16xf32, #tpu.memory_space<smem>>
    %74 = vector.broadcast %73 : f32 to vector<1x256xf32>
    %75 = arith.mulf %0, %74 : vector<1x256xf32>
    %c1_33 = arith.constant 1 : index
    %c4_34 = arith.constant 4 : index
    %76 = memref.load %arg1[%c1_33, %c4_34] : memref<2x16xf32, #tpu.memory_space<smem>>
    %77 = vector.broadcast %76 : f32 to vector<1x256xf32>
    %78 = arith.mulf %1, %77 : vector<1x256xf32>
    %79 = arith.addf %75, %78 : vector<1x256xf32>
    %c1_35 = arith.constant 1 : index
    %c8_36 = arith.constant 8 : index
    %80 = memref.load %arg1[%c1_35, %c8_36] : memref<2x16xf32, #tpu.memory_space<smem>>
    %81 = vector.broadcast %80 : f32 to vector<1x256xf32>
    %82 = arith.mulf %2, %81 : vector<1x256xf32>
    %83 = arith.addf %79, %82 : vector<1x256xf32>
    %c1_37 = arith.constant 1 : index
    %c12_38 = arith.constant 12 : index
    %84 = memref.load %arg1[%c1_37, %c12_38] : memref<2x16xf32, #tpu.memory_space<smem>>
    %85 = vector.broadcast %84 : f32 to vector<1x256xf32>
    %86 = arith.addf %83, %85 : vector<1x256xf32>
    %c1_39 = arith.constant 1 : index
    %c1_40 = arith.constant 1 : index
    %87 = memref.load %arg1[%c1_39, %c1_40] : memref<2x16xf32, #tpu.memory_space<smem>>
    %88 = vector.broadcast %87 : f32 to vector<1x256xf32>
    %89 = arith.mulf %0, %88 : vector<1x256xf32>
    %c1_41 = arith.constant 1 : index
    %c5_42 = arith.constant 5 : index
    %90 = memref.load %arg1[%c1_41, %c5_42] : memref<2x16xf32, #tpu.memory_space<smem>>
    %91 = vector.broadcast %90 : f32 to vector<1x256xf32>
    %92 = arith.mulf %1, %91 : vector<1x256xf32>
    %93 = arith.addf %89, %92 : vector<1x256xf32>
    %c1_43 = arith.constant 1 : index
    %c9_44 = arith.constant 9 : index
    %94 = memref.load %arg1[%c1_43, %c9_44] : memref<2x16xf32, #tpu.memory_space<smem>>
    %95 = vector.broadcast %94 : f32 to vector<1x256xf32>
    %96 = arith.mulf %2, %95 : vector<1x256xf32>
    %97 = arith.addf %93, %96 : vector<1x256xf32>
    %c1_45 = arith.constant 1 : index
    %c13_46 = arith.constant 13 : index
    %98 = memref.load %arg1[%c1_45, %c13_46] : memref<2x16xf32, #tpu.memory_space<smem>>
    %99 = vector.broadcast %98 : f32 to vector<1x256xf32>
    %100 = arith.addf %97, %99 : vector<1x256xf32>
    %c1_47 = arith.constant 1 : index
    %c2_48 = arith.constant 2 : index
    %101 = memref.load %arg1[%c1_47, %c2_48] : memref<2x16xf32, #tpu.memory_space<smem>>
    %102 = vector.broadcast %101 : f32 to vector<1x256xf32>
    %103 = arith.mulf %0, %102 : vector<1x256xf32>
    %c1_49 = arith.constant 1 : index
    %c6_50 = arith.constant 6 : index
    %104 = memref.load %arg1[%c1_49, %c6_50] : memref<2x16xf32, #tpu.memory_space<smem>>
    %105 = vector.broadcast %104 : f32 to vector<1x256xf32>
    %106 = arith.mulf %1, %105 : vector<1x256xf32>
    %107 = arith.addf %103, %106 : vector<1x256xf32>
    %c1_51 = arith.constant 1 : index
    %c10_52 = arith.constant 10 : index
    %108 = memref.load %arg1[%c1_51, %c10_52] : memref<2x16xf32, #tpu.memory_space<smem>>
    %109 = vector.broadcast %108 : f32 to vector<1x256xf32>
    %110 = arith.mulf %2, %109 : vector<1x256xf32>
    %111 = arith.addf %107, %110 : vector<1x256xf32>
    %c1_53 = arith.constant 1 : index
    %c14_54 = arith.constant 14 : index
    %112 = memref.load %arg1[%c1_53, %c14_54] : memref<2x16xf32, #tpu.memory_space<smem>>
    %113 = vector.broadcast %112 : f32 to vector<1x256xf32>
    %114 = arith.addf %111, %113 : vector<1x256xf32>
    %c1_55 = arith.constant 1 : index
    %c3_56 = arith.constant 3 : index
    %115 = memref.load %arg1[%c1_55, %c3_56] : memref<2x16xf32, #tpu.memory_space<smem>>
    %116 = vector.broadcast %115 : f32 to vector<1x256xf32>
    %117 = arith.mulf %0, %116 : vector<1x256xf32>
    %c1_57 = arith.constant 1 : index
    %c7_58 = arith.constant 7 : index
    %118 = memref.load %arg1[%c1_57, %c7_58] : memref<2x16xf32, #tpu.memory_space<smem>>
    %119 = vector.broadcast %118 : f32 to vector<1x256xf32>
    %120 = arith.mulf %1, %119 : vector<1x256xf32>
    %121 = arith.addf %117, %120 : vector<1x256xf32>
    %c1_59 = arith.constant 1 : index
    %c11_60 = arith.constant 11 : index
    %122 = memref.load %arg1[%c1_59, %c11_60] : memref<2x16xf32, #tpu.memory_space<smem>>
    %123 = vector.broadcast %122 : f32 to vector<1x256xf32>
    %124 = arith.mulf %2, %123 : vector<1x256xf32>
    %125 = arith.addf %121, %124 : vector<1x256xf32>
    %c1_61 = arith.constant 1 : index
    %c15_62 = arith.constant 15 : index
    %126 = memref.load %arg1[%c1_61, %c15_62] : memref<2x16xf32, #tpu.memory_space<smem>>
    %127 = vector.broadcast %126 : f32 to vector<1x256xf32>
    %128 = arith.addf %125, %127 : vector<1x256xf32>
    %cst_63 = arith.constant 1.000000e+00 : f32
    %129 = vector.broadcast %cst_63 : f32 to vector<1x256xf32>
    %130 = arith.divf %129, %128 : vector<1x256xf32>
    %131 = arith.mulf %86, %130 : vector<1x256xf32>
    %c1_64 = arith.constant 1 : index
    %c0_65 = arith.constant 0 : index
    %c0_66 = arith.constant 0 : index
    %132 = vector.load %arg3[%c1_64, %c0_65, %c0_66] : memref<2x3x256xf32, #tpu.memory_space<vmem>>, vector<1x1x256xf32>
    %133 = vector.shape_cast %132 : vector<1x1x256xf32> to vector<1x256xf32>
    %134 = vector.shape_cast %131 : vector<1x256xf32> to vector<1x1x256xf32>
    tpu.vector_store %arg3[%c1_64, %c0_65, %c0_66], %134 {strides = array<i32>} : memref<2x3x256xf32, #tpu.memory_space<vmem>>, vector<1x1x256xf32>,
    %135 = arith.mulf %100, %130 : vector<1x256xf32>
    %c1_67 = arith.constant 1 : index
    %c1_68 = arith.constant 1 : index
    %c0_69 = arith.constant 0 : index
    %136 = vector.load %arg3[%c1_67, %c1_68, %c0_69] : memref<2x3x256xf32, #tpu.memory_space<vmem>>, vector<1x1x256xf32>
    %137 = vector.shape_cast %136 : vector<1x1x256xf32> to vector<1x256xf32>
    %138 = vector.shape_cast %135 : vector<1x256xf32> to vector<1x1x256xf32>
    tpu.vector_store %arg3[%c1_67, %c1_68, %c0_69], %138 {strides = array<i32>} : memref<2x3x256xf32, #tpu.memory_space<vmem>>, vector<1x1x256xf32>,
    %139 = arith.mulf %114, %130 : vector<1x256xf32>
    %c1_70 = arith.constant 1 : index
    %c2_71 = arith.constant 2 : index
    %c0_72 = arith.constant 0 : index
    %140 = vector.load %arg3[%c1_70, %c2_71, %c0_72] : memref<2x3x256xf32, #tpu.memory_space<vmem>>, vector<1x1x256xf32>
    %141 = vector.shape_cast %140 : vector<1x1x256xf32> to vector<1x256xf32>
    %142 = vector.shape_cast %139 : vector<1x256xf32> to vector<1x1x256xf32>
    tpu.vector_store %arg3[%c1_70, %c2_71, %c0_72], %142 {strides = array<i32>} : memref<2x3x256xf32, #tpu.memory_space<vmem>>, vector<1x1x256xf32>,
    return
  }
  func.func @transform_0(%arg0: i32) -> (i32, i32) {
    %c0_i32 = arith.constant 0 : i32
    %c0_i32_0 = arith.constant 0 : i32
    %c0_i32_1 = arith.constant 0 : i32
    return %c0_i32, %c0_i32_0 : i32, i32
  }
  func.func @transform_1(%arg0: i32) -> (i32, i32) {
    %c0_i32 = arith.constant 0 : i32
    %c0_i32_0 = arith.constant 0 : i32
    return %c0_i32, %arg0 : i32, i32
  }
  func.func @transform_2(%arg0: i32) -> (i32, i32, i32) {
    %c0_i32 = arith.constant 0 : i32
    %c0_i32_0 = arith.constant 0 : i32
    %c0_i32_1 = arith.constant 0 : i32
    return %c0_i32, %c0_i32_0, %arg0 : i32, i32, i32
  }
}

</mosaic_0001>

<llo_original>
// kernel: tpu_custom_call.1
$region0: #{tpu_custom_call.1}
  #allocation0 [shape = 'u32[]', space=smem, size = 0x4, offset = 0x4, fixed_abs, tag = 'smem constant byte address 0x4 - core index']
  #allocation1 [shape = 'u32[144,128]{1,0:T(1,128)}', space=vmem, size = 0x12000, scoped, tag = 'internal scratch']
  %s0 = inlined_call_operand.hbm [shape: f32[2,16], index: 0, kind: input, shape index: {}]
  %s1 = inlined_call_operand.hbm [shape: f32[3,512], index: 1, kind: input, shape index: {}]
  %s2 = inlined_call_operand.vmem [shape: f32[2,3,512], index: 2, kind: output, shape index: {}]
  %s3 = sld [smem:[#allocation0]]
  $region83: #{tpu_custom_call.1} parent=0
    _
  %s5 = ssub.s32 1, %s3
  %s6 = scalar_select 0, %s5, %s3
  $region1: #{tpu_custom_call.1} parent=0
    #allocation2 [shape = 'u8[1024]{0}', space=smem, size = 0x400, scoped, tag = 'input window, operand 0, single buffered']
    #allocation3 [shape = 's32[2]{0}', space=sflag, size = 0x8, scoped, tag = 'scoped memory for tpu_custom_call.1']
    #allocation4 [shape = 's32[2]{0}', space=sflag, size = 0x8, scoped, tag = 'scoped memory for tpu_custom_call.1']
    #allocation5 [shape = 'u8[8192]{0}', space=vmem, size = 0x2000, scoped, tag = 'input window, operand 1']
    #allocation6 [shape = 'u8[16384]{0}', space=vmem, size = 0x4000, scoped, tag = 'output window, operand 0']
    %7 = vsyncpa [#allocation4], 0
    %8 = vsyncpa [#allocation3], 0
    %s9 = scalar_lea.sflag [#allocation3], 1
    %10 = vsyncpa %s9, 0
    loop: start=0, step=1, limit=4
    $region2: #{tpu_custom_call.1} parent=1 // loop_pre_header
      _
    $region3: #{tpu_custom_call.1} parent=1 // loop_header
      %s12 = sphi 0, %s16
      %p13 = scmp.ge.s32.totalorder %s12, 4
      %s20 = sphi 0, %s20
      %s22 = sphi 0, %s20
      %s23 = sphi 0, %s22
      %s37 = sphi 0, %s23
      %s43 = sphi 0, %s45
      %s46 = sphi 0, %s43
      %s47 = sphi 0, %s46
      %s63 = sphi 0, %s47
      %s69 = sphi 0, %s71
      %s72 = sphi 0, %s69
      %s73 = sphi 0, %s72
      %s89 = sphi 0, %s73
    $region4: #{tpu_custom_call.1} parent=1 // loop_header_branch
      %15 = sbr.rel (%p13) target = $region8
    $region5: #{tpu_custom_call.1} parent=1 // loop_body
      %s17 = ssub.s32 %s12, 1
      %s18 = ssub.s32 %s12, 2
      %s19 = sadd.s32 %s12, 1
      %s21 = sadd.s32 %s20, 1
      %p24 = scmp.eq.s32.totalorder %s12, 1
      %p25 = scmp.ne.s32.totalorder %s20, %s22
      %p26 = scmp.eq.s32.totalorder %s12, 0
      %p27 = por %p25, %p26
      %p28 = scmp.ne.s32.totalorder %s20, %s22
      %p29 = scmp.eq.s32.totalorder %s17, 1
      %p30 = por %p28, %p29
      %p31 = scmp.ne.s32.totalorder %s22, %s23
      %p32 = scmp.eq.s32.totalorder %s17, 0
      %p33 = por %p31, %p32
      %p34 = scmp.ne.s32.totalorder %s22, %s23
      %p35 = scmp.eq.s32.totalorder %s18, 1
      %p36 = por %p34, %p35
      %p38 = scmp.ne.s32.totalorder %s23, %s37
      %p39 = scmp.eq.s32.totalorder %s18, 0
      %p40 = por %p38, %p39
      %s41 = ssub.s32 %s12, %s19
      %p42 = scmp.eq.s32.totalorder %s41, 0
      %s44 = sadd.s32 %s43, 1
      %s45 = scalar_select %p42, %s43, %s44
      %p48 = pneg %p42
      %p49 = scmp.eq.s32.totalorder %s12, 1
      %p50 = por %p48, %p49
      %p51 = scmp.ne.s32.totalorder %s43, %s46
      %p52 = scmp.eq.s32.totalorder %s12, 0
      %p53 = por %p51, %p52
      %p54 = scmp.ne.s32.totalorder %s43, %s46
      %p55 = scmp.eq.s32.totalorder %s17, 1
      %p56 = por %p54, %p55
      %p57 = scmp.ne.s32.totalorder %s46, %s47
      %p58 = scmp.eq.s32.totalorder %s17, 0
      %p59 = por %p57, %p58
      %p60 = scmp.ne.s32.totalorder %s46, %s47
      %p61 = scmp.eq.s32.totalorder %s18, 1
      %p62 = por %p60, %p61
      %p64 = scmp.ne.s32.totalorder %s47, %s63
      %p65 = scmp.eq.s32.totalorder %s18, 0
      %p66 = por %p64, %p65
      %s67 = ssub.s32 %s12, %s19
      %p68 = scmp.eq.s32.totalorder %s67, 0
      %s70 = sadd.s32 %s69, 1
      %s71 = scalar_select %p68, %s69, %s70
      %p74 = pneg %p68
      %p75 = scmp.eq.s32.totalorder %s12, 1
      %p76 = por %p74, %p75
      %p77 = scmp.ne.s32.totalorder %s69, %s72
      %p78 = scmp.eq.s32.totalorder %s12, 0
      %p79 = por %p77, %p78
      %p80 = scmp.ne.s32.totalorder %s69, %s72
      %p81 = scmp.eq.s32.totalorder %s17, 1
      %p82 = por %p80, %p81
      %p83 = scmp.ne.s32.totalorder %s72, %s73
      %p84 = scmp.eq.s32.totalorder %s17, 0
      %p85 = por %p83, %p84
      %p86 = scmp.ne.s32.totalorder %s72, %s73
      %p87 = scmp.eq.s32.totalorder %s18, 1
      %p88 = por %p86, %p87
      %p90 = scmp.ne.s32.totalorder %s73, %s89
      %p91 = scmp.eq.s32.totalorder %s18, 0
      %p92 = por %p90, %p91
      %p93 = scmp.le.s32.totalorder 1, %s12
      %p94 = scmp.lt.s32.totalorder %s12, 3
      %p95 = pnand %p93, %p94
      %p96 = pneg %p95
      // Predicated region
      $region9: #{tpu_custom_call.1} parent=5 // pred_check
        _
      $region10: #{tpu_custom_call.1} parent=5 // pred_check_branch
        %98 = sbr.rel (%p95) target = $region12
      $region11: #{tpu_custom_call.1} parent=5 // pred_region
        %s99 = ssub.s32 %s12, 1
        // Predicated region
        $region13: #{tpu_custom_call.1} parent=11 // pred_check
          %p100 = pneg %p33
        $region14: #{tpu_custom_call.1} parent=11 // pred_check_branch
          %102 = sbr.rel (%p100) target = $region16
        $region15: #{tpu_custom_call.1} parent=11 // pred_region
          %s104 = ssub.s32 32, 32
          %105 = vsyncadd [#allocation4], %s104
          %108 = dma.hbm_to_smem %s0, 32, [#allocation2], [#allocation4]
        $region16: #{tpu_custom_call.1} parent=11 // pred_fallthru
          _
      $region12: #{tpu_custom_call.1} parent=5 // pred_fallthru
        _
      %p109 = scmp.lt.s32.totalorder %s12, 2
      // Predicated region
      $region17: #{tpu_custom_call.1} parent=5 // pred_check
        %p110 = pneg %p109
      $region18: #{tpu_custom_call.1} parent=5 // pred_check_branch
        %112 = sbr.rel (%p110) target = $region20
      $region19: #{tpu_custom_call.1} parent=5 // pred_region
        // Predicated region
        $region21: #{tpu_custom_call.1} parent=19 // pred_check
          %p113 = pneg %p53
        $region22: #{tpu_custom_call.1} parent=19 // pred_check_branch
          %115 = sbr.rel (%p113) target = $region24
        $region23: #{tpu_custom_call.1} parent=19 // pred_region
          %s116 = sand.u32 %s43, 1
          %s117 = scalar_lea.sflag [#allocation3], %s116
          %s118 = sand.u32 %s43, 1
          %s119 = smul.addr %s118, 8
          %s120 = scalar_lea.vmem [#allocation5], %s119
          %s121 = smul.u32 2, %s12
          %s123 = ssub.s32 128, 128
          %124 = vsyncadd %s117, %s123
          %s125 = smul.addr %s121, 64
          %s126 = scalar_lea.hbm %s1, %s125
          %s128 = sshll.u32 %s120, 4
          %s129 = int_to_ptr.vmem [resolvable:$true] %s128
          %131 = dma.hbm_to_vmem [thread:$0]  %s126, 128, %s129, %s117
        $region24: #{tpu_custom_call.1} parent=19 // pred_fallthru
          _
      $region20: #{tpu_custom_call.1} parent=5 // pred_fallthru
        _
      %p132 = scmp.le.s32.totalorder 1, %s12
      %p133 = scmp.lt.s32.totalorder %s12, 3
      %p134 = pnand %p132, %p133
      %p135 = pneg %p134
      // Predicated region
      $region25: #{tpu_custom_call.1} parent=5 // pred_check
        _
      $region26: #{tpu_custom_call.1} parent=5 // pred_check_branch
        %137 = sbr.rel (%p134) target = $region28
      $region27: #{tpu_custom_call.1} parent=5 // pred_region
        %s138 = ssub.s32 %s12, 1
        // Predicated region
        $region29: #{tpu_custom_call.1} parent=27 // pred_check
          %p139 = pneg %p33
        $region30: #{tpu_custom_call.1} parent=27 // pred_check_branch
          %141 = sbr.rel (%p139) target = $region32
        $region31: #{tpu_custom_call.1} parent=27 // pred_region
          %142 = dma.done [#allocation4], 32
        $region32: #{tpu_custom_call.1} parent=27 // pred_fallthru
          _
        %s143 = sand.u32 %s46, 1
        %s144 = scalar_lea.sflag [#allocation3], %s143
        %s145 = sand.u32 %s46, 1
        %s146 = smul.addr %s145, 8
        %s147 = scalar_lea.vmem [#allocation5], %s146
        // Predicated region
        $region33: #{tpu_custom_call.1} parent=27 // pred_check
          %p148 = pneg %p59
        $region34: #{tpu_custom_call.1} parent=27 // pred_check_branch
          %150 = sbr.rel (%p148) target = $region36
        $region35: #{tpu_custom_call.1} parent=27 // pred_region
          %151 = dma.done %s144, 128
        $region36: #{tpu_custom_call.1} parent=27 // pred_fallthru
          _
        %152 = sfence
        %p153 = pneg %p33
        %p154 = pneg %p30
        %s155 = sand.u32 %s46, 1
        %s156 = scalar_lea.sflag [#allocation3], %s155
        %s157 = sand.u32 %s46, 1
        %s158 = smul.addr %s157, 8
        %s159 = scalar_lea.vmem [#allocation5], %s158
        %p160 = pneg %p59
        %p161 = pneg %p56
        %p162 = pneg %p85
        %p163 = pneg %p82
        %s164 = sand.u32 %s72, 1
        %s165 = sand.u32 %s72, 1
        %s166 = smul.addr %s165, 16
        %s167 = scalar_lea.vmem [#allocation6], %s166
        %s168 = smul.u32 2, %s17
        %s169 = smul.u32 2, %s17
        %v170 = vld [vmem:[%s147] ss:$4 sm:$0x3]
        %s171 = scalar_lea.vmem %s147, 1 [#allocation5]
        %v172 = vld [vmem:[%s171] ss:$4 sm:$0x3]
        %s173 = scalar_lea.vmem %s147, 2 [#allocation5]
        %v174 = vld [vmem:[%s173] ss:$4 sm:$0x3]
        %s175 = sld [smem:[#allocation2]]
        %v176 = vstv %s175
        %v177 = vmul.f32 %v170, %v176
        %s178 = sld [smem:[#allocation2 + $0x4]]
        %v179 = vstv %s178
        %v180 = vmul.f32 %v172, %v179
        %v181 = vadd.f32 %v177, %v180
        %s182 = sld [smem:[#allocation2 + $0x8]]
        %v183 = vstv %s182
        %v184 = vmul.f32 %v174, %v183
        %v185 = vadd.f32 %v181, %v184
        %s186 = sld [smem:[#allocation2 + $0xc]]
        %v187 = vstv %s186
        %v188 = vadd.f32 %v185, %v187
        %s189 = sld [smem:[#allocation2 + $0x1]]
        %v190 = vstv %s189
        %v191 = vmul.f32 %v170, %v190
        %s192 = sld [smem:[#allocation2 + $0x5]]
        %v193 = vstv %s192
        %v194 = vmul.f32 %v172, %v193
        %v195 = vadd.f32 %v191, %v194
        %s196 = sld [smem:[#allocation2 + $0x9]]
        %v197 = vstv %s196
        %v198 = vmul.f32 %v174, %v197
        %v199 = vadd.f32 %v195, %v198
        %s200 = sld [smem:[#allocation2 + $0xd]]
        %v201 = vstv %s200
        %v202 = vadd.f32 %v199, %v201
        %s203 = sld [smem:[#allocation2 + $0x2]]
        %v204 = vstv %s203
        %v205 = vmul.f32 %v170, %v204
        %s206 = sld [smem:[#allocation2 + $0x6]]
        %v207 = vstv %s206
        %v208 = vmul.f32 %v172, %v207
        %v209 = vadd.f32 %v205, %v208
        %s210 = sld [smem:[#allocation2 + $0xa]]
        %v211 = vstv %s210
        %v212 = vmul.f32 %v174, %v211
        %v213 = vadd.f32 %v209, %v212
        %s214 = sld [smem:[#allocation2 + $0xe]]
        %v215 = vstv %s214
        %v216 = vadd.f32 %v213, %v215
        %s217 = sld [smem:[#allocation2 + $0x3]]
        %v218 = vstv %s217
        %v219 = vmul.f32 %v170, %v218
        %s220 = sld [smem:[#allocation2 + $0x7]]
        %v221 = vstv %s220
        %v222 = vmul.f32 %v172, %v221
        %v223 = vadd.f32 %v219, %v222
        %s224 = sld [smem:[#allocation2 + $0xb]]
        %v225 = vstv %s224
        %v226 = vmul.f32 %v174, %v225
        %v227 = vadd.f32 %v223, %v226
        %s228 = sld [smem:[#allocation2 + $0xf]]
        %v229 = vstv %s228
        %v230 = vadd.f32 %v227, %v229
        %v231 = vrcp.pop %v230
        %v232 = vmul.f32 1.0, %v231
        %v233 = vmul.f32 %v188, %v232
        %v234 = vlaneseq
        %vm235 = vcmp.ge.s32.totalorder %v234, 0
        %vm236 = vcmp.lt.s32.totalorder %v234, 256
        %vm237 = vmand %vm235, %vm236
        %238 = vst.msk [vmem:[%s167] ss:$4 sm:$0x3] %vm237, %v233
        %v239 = vmul.f32 %v202, %v232
        %s240 = scalar_lea.vmem %s167, 1 [#allocation6]
        %241 = vst.msk [vmem:[%s240] ss:$4 sm:$0x3] %vm237, %v239
        %v242 = vmul.f32 %v216, %v232
        %s243 = scalar_lea.vmem %s167, 2 [#allocation6]
        %244 = vst.msk [vmem:[%s243] ss:$4 sm:$0x3] %vm237, %v242
        %s245 = sld [smem:[#allocation2 + $0x80]]
        %v246 = vstv %s245
        %v247 = vmul.f32 %v170, %v246
        %s248 = sld [smem:[#allocation2 + $0x84]]
        %v249 = vstv %s248
        %v250 = vmul.f32 %v172, %v249
        %v251 = vadd.f32 %v247, %v250
        %s252 = sld [smem:[#allocation2 + $0x88]]
        %v253 = vstv %s252
        %v254 = vmul.f32 %v174, %v253
        %v255 = vadd.f32 %v251, %v254
        %s256 = sld [smem:[#allocation2 + $0x8c]]
        %v257 = vstv %s256
        %v258 = vadd.f32 %v255, %v257
        %s259 = sld [smem:[#allocation2 + $0x81]]
        %v260 = vstv %s259
        %v261 = vmul.f32 %v170, %v260
        %s262 = sld [smem:[#allocation2 + $0x85]]
        %v263 = vstv %s262
        %v264 = vmul.f32 %v172, %v263
        %v265 = vadd.f32 %v261, %v264
        %s266 = sld [smem:[#allocation2 + $0x89]]
        %v267 = vstv %s266
        %v268 = vmul.f32 %v174, %v267
        %v269 = vadd.f32 %v265, %v268
        %s270 = sld [smem:[#allocation2 + $0x8d]]
        %v271 = vstv %s270
        %v272 = vadd.f32 %v269, %v271
        %s273 = sld [smem:[#allocation2 + $0x82]]
        %v274 = vstv %s273
        %v275 = vmul.f32 %v170, %v274
        %s276 = sld [smem:[#allocation2 + $0x86]]
        %v277 = vstv %s276
        %v278 = vmul.f32 %v172, %v277
        %v279 = vadd.f32 %v275, %v278
        %s280 = sld [smem:[#allocation2 + $0x8a]]
        %v281 = vstv %s280
        %v282 = vmul.f32 %v174, %v281
        %v283 = vadd.f32 %v279, %v282
        %s284 = sld [smem:[#allocation2 + $0x8e]]
        %v285 = vstv %s284
        %v286 = vadd.f32 %v283, %v285
        %s287 = sld [smem:[#allocation2 + $0x83]]
        %v288 = vstv %s287
        %v289 = vmul.f32 %v170, %v288
        %s290 = sld [smem:[#allocation2 + $0x87]]
        %v291 = vstv %s290
        %v292 = vmul.f32 %v172, %v291
        %v293 = vadd.f32 %v289, %v292
        %s294 = sld [smem:[#allocation2 + $0x8b]]
        %v295 = vstv %s294
        %v296 = vmul.f32 %v174, %v295
        %v297 = vadd.f32 %v293, %v296
        %s298 = sld [smem:[#allocation2 + $0x8f]]
        %v299 = vstv %s298
        %v300 = vadd.f32 %v297, %v299
        %v301 = vrcp.pop %v300
        %v302 = vmul.f32 1.0, %v301
        %v303 = vmul.f32 %v258, %v302
        %s304 = scalar_lea.vmem %s167, 8 [#allocation6]
        %305 = vst.msk [vmem:[%s304] ss:$4 sm:$0x3] %vm237, %v303
        %v306 = vmul.f32 %v272, %v302
        %s307 = scalar_lea.vmem %s304, 1 [#allocation6]
        %308 = vst.msk [vmem:[%s307] ss:$4 sm:$0x3] %vm237, %v306
        %v309 = vmul.f32 %v286, %v302
        %s310 = scalar_lea.vmem %s304, 2 [#allocation6]
        %311 = vst.msk [vmem:[%s310] ss:$4 sm:$0x3] %vm237, %v309
        %s312 = sand.u32 %s72, 1
        %s313 = sand.u32 %s72, 1
        %s314 = smul.addr %s313, 16
        %s315 = scalar_lea.vmem [#allocation6], %s314
        // Predicated region
        $region37: #{tpu_custom_call.1} parent=27 // pred_check
          %p316 = pneg %p82
        $region38: #{tpu_custom_call.1} parent=27 // pred_check_branch
          %318 = sbr.rel (%p316) target = $region40
        $region39: #{tpu_custom_call.1} parent=27 // pred_region
          %s319 = smul.u32 2, %s17
          %s320 = smul.addr %s319, 4
          %s321 = scalar_lea.vmem %s2, %s320
          // Predicated region
          $region41: #{tpu_custom_call.1} parent=39 // pred_check
            _
          $region42: #{tpu_custom_call.1} parent=39 // pred_check_branch
            %323 = sbr.rel (0) target = $region44
          $region43: #{tpu_custom_call.1} parent=39 // pred_region
            // Predicated region
            $region45: #{tpu_custom_call.1} parent=43 // pred_check
              _
            $region46: #{tpu_custom_call.1} parent=43 // pred_check_branch
              %325 = sbr.rel (0) target = $region48
            $region47: #{tpu_custom_call.1} parent=43 // pred_region
              // Predicated region
              $region60: #{tpu_custom_call.1} parent=47 // pred_check
                _
              $region61: #{tpu_custom_call.1} parent=47 // pred_check_branch
                %342 = sbr.rel (0) target = $region63
              $region62: #{tpu_custom_call.1} parent=47 // pred_region
                loop: start=0, step=1, limit=1
                $region64: #{tpu_custom_call.1} parent=62 // loop_pre_header
                  _
                $region65: #{tpu_custom_call.1} parent=62 // loop_header
                  %s344 = sphi 0, %s348
                  %p345 = scmp.ge.s32.totalorder %s344, 1
                  %s349 = sphi %s315, %s315
                  %s350 = sphi %s321, %s321
                $region66: #{tpu_custom_call.1} parent=62 // loop_header_branch
                  %347 = sbr.rel (%p345) target = $region70
                $region67: #{tpu_custom_call.1} parent=62 // loop_body
                  %v351 = vld [vmem:[%s349] sm:$0xff]
                  %352 = vst [vmem:[%s350] sm:$0xff] %v351
                  %v353 = vld [vmem:[%s349 + $0x8] sm:$0xff]
                  %354 = vst [vmem:[%s350 + $0x10] sm:$0xff] %v353
                $region68: #{tpu_custom_call.1} parent=62 // loop_footer
                  %s348 = sadd.s32 1, %s344
                $region69: #{tpu_custom_call.1} parent=62 // loop_footer_branch
                  %343 = sbr.rel target = $region65
                $region70: #{tpu_custom_call.1} parent=62 // loop_exit
                  _
              $region63: #{tpu_custom_call.1} parent=47 // pred_fallthru
                _
              // Predicated region
              $region71: #{tpu_custom_call.1} parent=47 // pred_check
                _
              $region72: #{tpu_custom_call.1} parent=47 // pred_check_branch
                %356 = sbr.rel target = $region74
              $region73: #{tpu_custom_call.1} parent=47 // pred_region
                _
              $region74: #{tpu_custom_call.1} parent=47 // pred_fallthru
                _
            $region48: #{tpu_custom_call.1} parent=43 // pred_fallthru
              _
            // Predicated region
            $region49: #{tpu_custom_call.1} parent=43 // pred_check
              _
            $region50: #{tpu_custom_call.1} parent=43 // pred_check_branch
              %327 = sbr.rel target = $region52
            $region51: #{tpu_custom_call.1} parent=43 // pred_region
              loop: start=0, step=1, limit=1
              $region53: #{tpu_custom_call.1} parent=51 // loop_pre_header
                _
              $region54: #{tpu_custom_call.1} parent=51 // loop_header
                %s330 = sphi 0, %s334
                %p331 = scmp.ge.s32.totalorder %s330, 1
                %s335 = sphi %s315, %s315
                %s336 = sphi %s321, %s321
              $region55: #{tpu_custom_call.1} parent=51 // loop_header_branch
                %333 = sbr.rel (%p331) target = $region59
              $region56: #{tpu_custom_call.1} parent=51 // loop_body
                %v337 = vld [vmem:[%s335] sm:$0xff]
                %338 = vst [vmem:[%s336] sm:$0xff] %v337
                %v339 = vld [vmem:[%s335 + $0x8] sm:$0xff]
                %340 = vst [vmem:[%s336 + $0x10] sm:$0xff] %v339
              $region57: #{tpu_custom_call.1} parent=51 // loop_footer
                %s334 = sadd.s32 1, %s330
              $region58: #{tpu_custom_call.1} parent=51 // loop_footer_branch
                %329 = sbr.rel target = $region54
              $region59: #{tpu_custom_call.1} parent=51 // loop_exit
                _
            $region52: #{tpu_custom_call.1} parent=43 // pred_fallthru
              _
          $region44: #{tpu_custom_call.1} parent=39 // pred_fallthru
            _
          %357 = vnop
        $region40: #{tpu_custom_call.1} parent=27 // pred_fallthru
          _
      $region28: #{tpu_custom_call.1} parent=5 // pred_fallthru
        _
      %p358 = scmp.le.s32.totalorder 2, %s12
      // Predicated region
      $region75: #{tpu_custom_call.1} parent=5 // pred_check
        %p359 = pneg %p358
      $region76: #{tpu_custom_call.1} parent=5 // pred_check_branch
        %361 = sbr.rel (%p359) target = $region78
      $region77: #{tpu_custom_call.1} parent=5 // pred_region
        %s362 = ssub.s32 %s12, 2
        // Predicated region
        $region79: #{tpu_custom_call.1} parent=77 // pred_check
          %p363 = pneg %p88
        $region80: #{tpu_custom_call.1} parent=77 // pred_check_branch
          %365 = sbr.rel (%p363) target = $region82
        $region81: #{tpu_custom_call.1} parent=77 // pred_region
          %s366 = sand.u32 %s73, 1
          %s367 = sand.u32 %s73, 1
          %s368 = smul.addr %s367, 16
          %s369 = scalar_lea.vmem [#allocation6], %s368
        $region82: #{tpu_custom_call.1} parent=77 // pred_fallthru
          _
      $region78: #{tpu_custom_call.1} parent=5 // pred_fallthru
        _
    $region6: #{tpu_custom_call.1} parent=1 // loop_footer
      %s16 = sadd.s32 1, %s12
    $region7: #{tpu_custom_call.1} parent=1 // loop_footer_branch
      %11 = sbr.rel target = $region3
    $region8: #{tpu_custom_call.1} parent=1 // loop_exit
      _
    %370 = vsyncpa [#allocation3], 1
    %s371 = scalar_lea.sflag [#allocation3], 1
    %372 = vsyncpa %s371, 1
    %373 = vsyncpa [#allocation4], 1
    %s374 = scalar_lea.sflag [#allocation4], 1
    %375 = vsyncpa %s374, 1

</llo_original>
